<compile_context>
chip_gen: v5e
topology: v5e:2x2
jax: 0.10.0
libtpu: 0.0.40
codegen_flags: <defaults>
</compile_context>

<pallas_src>
import functools

import numpy as np
import jax
import jax.numpy as jnp
from jax.experimental import pallas as pl
from jax.experimental.pallas import tpu as pltpu

LN_EPS = 1e-6  # eps of the pre-norm LayerNorm inside PositionwiseFeedForward


def _round_up(x, m):
    return ((x + m - 1) // m) * m


def decoder_kernel(x_ref, g_ref, be_ref, w1_ref, b1_ref, w2_ref, b2_ref,
                   wh_ref, bh_ref, mask_ref, out_ref):
    x = x_ref[...]                                           # (T, E) f32

    # ---- PositionwiseFeedForward (pre-norm): x + W2(relu(W1(LN(x))))
    # TODO(synk): nn.Dropout(p=dropout) is a train-mode op; inference forward is identity.
    mean = jnp.mean(x, axis=-1, keepdims=True)
    var = jnp.mean((x - mean) ** 2, axis=-1, keepdims=True)
    xn = (x - mean) * jax.lax.rsqrt(var + LN_EPS) * g_ref[...] + be_ref[...]

    h = jnp.dot(xn, w1_ref[...], preferred_element_type=jnp.float32) + b1_ref[...]
    h = jnp.maximum(h, 0.0)
    ffn = jnp.dot(h, w2_ref[...], preferred_element_type=jnp.float32) + b2_ref[...] + x

    # ---- fused heads: [mu | sigma | zero-pad] in one lane-dense (E, out_cols)
    # matmul; ReLU applied only where mask==0 (sigma + pad lanes).  Padded tail
    # rows (all-zero activations) are numerically safe (LN with eps>0 gives 0)
    # and are sliced off in the wrapper.
    heads = jnp.dot(ffn, wh_ref[...], preferred_element_type=jnp.float32) + bh_ref[...]
    out_ref[...] = jnp.where(mask_ref[...] > 0.5, heads, jnp.maximum(heads, 0.0))


def prepare_params(params, c_dim):
    """One-time (init-time) packing of the Decoder parameters for the kernel."""
    E = params["w1"].shape[0]
    two_c = 2 * c_dim
    out_cols = _round_up(two_c, 128)          # lane-dense output width

    wh = jnp.concatenate([params["w_mu"], params["w_sigma"]], axis=1)
    bh = jnp.concatenate([params["b_mu"].reshape(1, -1),
                          params["b_sigma"].reshape(1, -1)], axis=1)
    wh = jnp.pad(wh, ((0, 0), (0, out_cols - two_c)))
    bh = jnp.pad(bh, ((0, 0), (0, out_cols - two_c)))
    mask = (jnp.arange(out_cols)[None, :] < c_dim).astype(jnp.float32)  # 1 on mu lanes

    return (params["ln_g"].reshape(1, E).astype(jnp.float32),
            params["ln_b"].reshape(1, E).astype(jnp.float32),
            params["w1"].astype(jnp.float32),
            params["b1"].reshape(1, -1).astype(jnp.float32),
            params["w2"].astype(jnp.float32),
            params["b2"].reshape(1, -1).astype(jnp.float32),
            wh.astype(jnp.float32),
            bh.astype(jnp.float32),
            mask)


@functools.partial(jax.jit, static_argnames=("c_dim", "token_tile"))
def decoder_forward(z_q, prepped, *, c_dim, token_tile=1024):
    B, S, E = z_q.shape
    N = B * S
    out_cols = prepped[6].shape[1]            # padded head width (multiple of 128)

    # Large token tile (amortise ~0.35us/step overhead, wide MXU M dim), but
    # capped so the grid keeps >= 2 parallel steps whenever N allows — lets
    # the v7x megacore use both TensorCores.  Always a multiple of 8 sublanes.
    tile = min(token_tile, max(8, _round_up(-(-N // 2), 8)))
    n_pad = int(pl.cdiv(N, tile)) * tile

    x = z_q.reshape(N, E).astype(jnp.float32)
    if n_pad != N:  # static under jit: skip the pad copy when already aligned
        x = jnp.pad(x, ((0, n_pad - N), (0, 0)))

    # constant index maps -> weights/biases/mask stay resident in VMEM
    in_specs = [pl.BlockSpec((tile, E), lambda i: (i, 0))]
    in_specs += [pl.BlockSpec(c.shape, lambda i: (0, 0)) for c in prepped]

    out = pl.pallas_call(
        decoder_kernel,
        grid=(n_pad // tile,),
        in_specs=in_specs,
        out_specs=pl.BlockSpec((tile, out_cols), lambda i: (i, 0)),
        out_shape=jax.ShapeDtypeStruct((n_pad, out_cols), jnp.float32),
        compiler_params=pltpu.CompilerParams(dimension_semantics=("parallel",)),
    )(x, *prepped)

    mu = out[:N, :c_dim].reshape(B, S, c_dim)
    sigma = out[:N, c_dim:2 * c_dim].reshape(B, S, c_dim)
    return mu, sigma


def reference(z_q, params):
    """Pure-JAX f32 mirror of the PyTorch forward (for correctness checking)."""
    hp = jax.lax.Precision.HIGHEST
    x = z_q
    mean = x.mean(-1, keepdims=True)
    var = ((x - mean) ** 2).mean(-1, keepdims=True)
    xn = (x - mean) / jnp.sqrt(var + LN_EPS) * params["ln_g"] + params["ln_b"]
    h = jax.nn.relu(jnp.dot(xn, params["w1"], precision=hp) + params["b1"])
    ffn = jnp.dot(h, params["w2"], precision=hp) + params["b2"] + x
    mu = jnp.dot(ffn, params["w_mu"], precision=hp) + params["b_mu"]
    sigma = jax.nn.relu(jnp.dot(ffn, params["w_sigma"], precision=hp) + params["b_sigma"])
    return mu, sigma


if __name__ == "__main__":
    B, S, E, H, C = 2, 8, 32, 64, 4

    key = jax.random.PRNGKey(0)
    ks = jax.random.split(key, 8)

    def lin(k, n_in, n_out):
        kw, kb = jax.random.split(k)
        scale = 1.0 / np.sqrt(n_in)
        return (jax.random.normal(kw, (n_in, n_out), jnp.float32) * scale,
                jax.random.normal(kb, (1, n_out), jnp.float32) * scale)

    w1, b1 = lin(ks[1], E, H)
    w2, b2 = lin(ks[2], H, E)
    w_mu, b_mu = lin(ks[3], E, C)
    w_sigma, b_sigma = lin(ks[4], E, C)
    params = dict(
        ln_g=1.0 + 0.05 * jax.random.normal(ks[5], (1, E), jnp.float32),
        ln_b=0.05 * jax.random.normal(ks[6], (1, E), jnp.float32),
        w1=w1, b1=b1, w2=w2, b2=b2,
        w_mu=w_mu, b_mu=b_mu, w_sigma=w_sigma, b_sigma=b_sigma,
    )

    z_q = jax.random.normal(ks[0], (B, S, E), jnp.float32)

    prepped = jax.block_until_ready(prepare_params(params, C))   # one-time packing

    mu, sigma = decoder_forward(z_q, prepped, c_dim=C)
    (mu, sigma) = jax.block_until_ready((mu, sigma))

    mu_ref, sigma_ref = reference(z_q, params)
    # f32 operands everywhere (no bf16 MXU cast); tolerance leaves headroom for
    # MXU multi-pass f32 accumulation-order differences.
    np.testing.assert_allclose(np.asarray(mu), np.asarray(mu_ref), rtol=1e-2, atol=1e-2)
    np.testing.assert_allclose(np.asarray(sigma), np.asarray(sigma_ref), rtol=1e-2, atol=1e-2)

    print("KERNEL_OK")
</pallas_src>

<mosaic_0001>
module attributes {stable_mosaic.version = 11 : i64} {
  func.func @decoder_kernel(%arg0: i32, %arg1: memref<8x32xf32, #tpu.memory_space<vmem>>, %arg2: memref<1x32xf32, #tpu.memory_space<vmem>>, %arg3: memref<1x32xf32, #tpu.memory_space<vmem>>, %arg4: memref<32x64xf32, #tpu.memory_space<vmem>>, %arg5: memref<1x64xf32, #tpu.memory_space<vmem>>, %arg6: memref<64x32xf32, #tpu.memory_space<vmem>>, %arg7: memref<1x32xf32, #tpu.memory_space<vmem>>, %arg8: memref<32x128xf32, #tpu.memory_space<vmem>>, %arg9: memref<1x128xf32, #tpu.memory_space<vmem>>, %arg10: memref<1x128xf32, #tpu.memory_space<vmem>>, %arg11: memref<8x128xf32, #tpu.memory_space<vmem>>) attributes {dimension_semantics = [#tpu.dimension_semantics<parallel>], iteration_bounds = array<i64: 2>, scalar_prefetch = 0 : i64, scratch_operands = 0 : i64, tpu.core_type = #tpu.core_type<tc>, window_params = [{transform_indices = @transform_0, window_bounds = array<i64: 8, 32>}, {pipeline_mode = #tpu.pipeline_mode<synchronous>, transform_indices = @transform_1, window_bounds = array<i64: 1, 32>}, {pipeline_mode = #tpu.pipeline_mode<synchronous>, transform_indices = @transform_2, window_bounds = array<i64: 1, 32>}, {pipeline_mode = #tpu.pipeline_mode<synchronous>, transform_indices = @transform_3, window_bounds = array<i64: 32, 64>}, {pipeline_mode = #tpu.pipeline_mode<synchronous>, transform_indices = @transform_4, window_bounds = array<i64: 1, 64>}, {pipeline_mode = #tpu.pipeline_mode<synchronous>, transform_indices = @transform_5, window_bounds = array<i64: 64, 32>}, {pipeline_mode = #tpu.pipeline_mode<synchronous>, transform_indices = @transform_6, window_bounds = array<i64: 1, 32>}, {pipeline_mode = #tpu.pipeline_mode<synchronous>, transform_indices = @transform_7, window_bounds = array<i64: 32, 128>}, {pipeline_mode = #tpu.pipeline_mode<synchronous>, transform_indices = @transform_8, window_bounds = array<i64: 1, 128>}, {pipeline_mode = #tpu.pipeline_mode<synchronous>, transform_indices = @transform_9, window_bounds = array<i64: 1, 128>}, {transform_indices = @transform_10, window_bounds = array<i64: 8, 128>}]} {
    %c0 = arith.constant 0 : index
    %c0_0 = arith.constant 0 : index
    %0 = vector.load %arg1[%c0, %c0_0] : memref<8x32xf32, #tpu.memory_space<vmem>>, vector<8x32xf32>
    %cst = arith.constant dense<0.000000e+00> : vector<8xf32>
    %1 = vector.multi_reduction <add>, %0, %cst [1] : vector<8x32xf32> to vector<8xf32>
    %2 = vector.shape_cast %1 : vector<8xf32> to vector<8x1xf32>
    %cst_1 = arith.constant 3.200000e+01 : f32
    %3 = vector.broadcast %cst_1 : f32 to vector<8x1xf32>
    %4 = arith.divf %2, %3 : vector<8x1xf32>
    %5 = vector.broadcast %4 : vector<8x1xf32> to vector<8x32xf32>
    %6 = arith.subf %0, %5 : vector<8x32xf32>
    %7 = arith.mulf %6, %6 : vector<8x32xf32>
    %cst_2 = arith.constant dense<0.000000e+00> : vector<8xf32>
    %8 = vector.multi_reduction <add>, %7, %cst_2 [1] : vector<8x32xf32> to vector<8xf32>
    %9 = vector.shape_cast %8 : vector<8xf32> to vector<8x1xf32>
    %cst_3 = arith.constant 3.200000e+01 : f32
    %10 = vector.broadcast %cst_3 : f32 to vector<8x1xf32>
    %11 = arith.divf %9, %10 : vector<8x1xf32>
    %12 = vector.broadcast %4 : vector<8x1xf32> to vector<8x32xf32>
    %13 = arith.subf %0, %12 : vector<8x32xf32>
    %cst_4 = arith.constant 9.99999997E-7 : f32
    %14 = vector.broadcast %cst_4 : f32 to vector<8x1xf32>
    %15 = arith.addf %11, %14 : vector<8x1xf32>
    %16 = math.rsqrt %15 : vector<8x1xf32>
    %17 = vector.broadcast %16 : vector<8x1xf32> to vector<8x32xf32>
    %18 = arith.mulf %13, %17 : vector<8x32xf32>
    %c0_5 = arith.constant 0 : index
    %c0_6 = arith.constant 0 : index
    %19 = vector.load %arg2[%c0_5, %c0_6] : memref<1x32xf32, #tpu.memory_space<vmem>>, vector<1x32xf32>
    %20 = vector.broadcast %19 : vector<1x32xf32> to vector<8x32xf32>
    %21 = arith.mulf %18, %20 : vector<8x32xf32>
    %c0_7 = arith.constant 0 : index
    %c0_8 = arith.constant 0 : index
    %22 = vector.load %arg3[%c0_7, %c0_8] : memref<1x32xf32, #tpu.memory_space<vmem>>, vector<1x32xf32>
    %23 = vector.broadcast %22 : vector<1x32xf32> to vector<8x32xf32>
    %24 = arith.addf %21, %23 : vector<8x32xf32>
    %c0_9 = arith.constant 0 : index
    %c0_10 = arith.constant 0 : index
    %25 = vector.load %arg4[%c0_9, %c0_10] : memref<32x64xf32, #tpu.memory_space<vmem>>, vector<32x64xf32>
    %cst_11 = arith.constant dense<0.000000e+00> : vector<8x64xf32>
    %26 = tpu.matmul %24, %25, %cst_11 {dimension_numbers = #tpu.dot_dimension_numbers<[1], [0], [0], [1], [0, 0, 1, 1], [], []>} : vector<8x32xf32>, vector<32x64xf32>, vector<8x64xf32> -> vector<8x64xf32>
    %c0_12 = arith.constant 0 : index
    %c0_13 = arith.constant 0 : index
    %27 = vector.load %arg5[%c0_12, %c0_13] : memref<1x64xf32, #tpu.memory_space<vmem>>, vector<1x64xf32>
    %28 = vector.broadcast %27 : vector<1x64xf32> to vector<8x64xf32>
    %29 = arith.addf %26, %28 : vector<8x64xf32>
    %cst_14 = arith.constant 0.000000e+00 : f32
    %30 = vector.broadcast %cst_14 : f32 to vector<8x64xf32>
    %31 = arith.maximumf %29, %30 : vector<8x64xf32>
    %c0_15 = arith.constant 0 : index
    %c0_16 = arith.constant 0 : index
    %32 = vector.load %arg6[%c0_15, %c0_16] : memref<64x32xf32, #tpu.memory_space<vmem>>, vector<64x32xf32>
    %cst_17 = arith.constant dense<0.000000e+00> : vector<8x32xf32>
    %33 = tpu.matmul %31, %32, %cst_17 {dimension_numbers = #tpu.dot_dimension_numbers<[1], [0], [0], [1], [0, 0, 1, 1], [], []>} : vector<8x64xf32>, vector<64x32xf32>, vector<8x32xf32> -> vector<8x32xf32>
    %c0_18 = arith.constant 0 : index
    %c0_19 = arith.constant 0 : index
    %34 = vector.load %arg7[%c0_18, %c0_19] : memref<1x32xf32, #tpu.memory_space<vmem>>, vector<1x32xf32>
    %35 = vector.broadcast %34 : vector<1x32xf32> to vector<8x32xf32>
    %36 = arith.addf %33, %35 : vector<8x32xf32>
    %37 = arith.addf %36, %0 : vector<8x32xf32>
    %c0_20 = arith.constant 0 : index
    %c0_21 = arith.constant 0 : index
    %38 = vector.load %arg8[%c0_20, %c0_21] : memref<32x128xf32, #tpu.memory_space<vmem>>, vector<32x128xf32>
    %cst_22 = arith.constant dense<0.000000e+00> : vector<8x128xf32>
    %39 = tpu.matmul %37, %38, %cst_22 {dimension_numbers = #tpu.dot_dimension_numbers<[1], [0], [0], [1], [0, 0, 1, 1], [], []>} : vector<8x32xf32>, vector<32x128xf32>, vector<8x128xf32> -> vector<8x128xf32>
    %c0_23 = arith.constant 0 : index
    %c0_24 = arith.constant 0 : index
    %40 = vector.load %arg9[%c0_23, %c0_24] : memref<1x128xf32, #tpu.memory_space<vmem>>, vector<1x128xf32>
    %41 = vector.broadcast %40 : vector<1x128xf32> to vector<8x128xf32>
    %42 = arith.addf %39, %41 : vector<8x128xf32>
    %c0_25 = arith.constant 0 : index
    %c0_26 = arith.constant 0 : index
    %43 = vector.load %arg10[%c0_25, %c0_26] : memref<1x128xf32, #tpu.memory_space<vmem>>, vector<1x128xf32>
    %cst_27 = arith.constant 5.000000e-01 : f32
    %44 = vector.broadcast %cst_27 : f32 to vector<1x128xf32>
    %45 = arith.cmpf ogt, %43, %44 : vector<1x128xf32>
    %cst_28 = arith.constant 0.000000e+00 : f32
    %46 = vector.broadcast %cst_28 : f32 to vector<8x128xf32>
    %47 = arith.maximumf %42, %46 : vector<8x128xf32>
    %48 = vector.shape_cast %45 : vector<1x128xi1> to vector<1x128xi1>
    %49 = vector.broadcast %48 : vector<1x128xi1> to vector<8x128xi1>
    %50 = arith.select %49, %42, %47 : vector<8x128xi1>, vector<8x128xf32>
    %c0_29 = arith.constant 0 : index
    %c0_30 = arith.constant 0 : index
    %51 = vector.load %arg11[%c0_29, %c0_30] : memref<8x128xf32, #tpu.memory_space<vmem>>, vector<8x128xf32>
    tpu.vector_store %arg11[%c0_29, %c0_30], %50 {strides = array<i32>} : memref<8x128xf32, #tpu.memory_space<vmem>>, vector<8x128xf32>,
    return
  }
  func.func @transform_0(%arg0: i32) -> (i32, i32) {
    %c0_i32 = arith.constant 0 : i32
    %c0_i32_0 = arith.constant 0 : i32
    return %arg0, %c0_i32 : i32, i32
  }
  func.func @transform_1(%arg0: i32) -> (i32, i32) {
    %c0_i32 = arith.constant 0 : i32
    %c0_i32_0 = arith.constant 0 : i32
    %c0_i32_1 = arith.constant 0 : i32
    return %c0_i32, %c0_i32_0 : i32, i32
  }
  func.func @transform_2(%arg0: i32) -> (i32, i32) {
    %c0_i32 = arith.constant 0 : i32
    %c0_i32_0 = arith.constant 0 : i32
    %c0_i32_1 = arith.constant 0 : i32
    return %c0_i32, %c0_i32_0 : i32, i32
  }
  func.func @transform_3(%arg0: i32) -> (i32, i32) {
    %c0_i32 = arith.constant 0 : i32
    %c0_i32_0 = arith.constant 0 : i32
    %c0_i32_1 = arith.constant 0 : i32
    return %c0_i32, %c0_i32_0 : i32, i32
  }
  func.func @transform_4(%arg0: i32) -> (i32, i32) {
    %c0_i32 = arith.constant 0 : i32
    %c0_i32_0 = arith.constant 0 : i32
    %c0_i32_1 = arith.constant 0 : i32
    return %c0_i32, %c0_i32_0 : i32, i32
  }
  func.func @transform_5(%arg0: i32) -> (i32, i32) {
    %c0_i32 = arith.constant 0 : i32
    %c0_i32_0 = arith.constant 0 : i32
    %c0_i32_1 = arith.constant 0 : i32
    return %c0_i32, %c0_i32_0 : i32, i32
  }
  func.func @transform_6(%arg0: i32) -> (i32, i32) {
    %c0_i32 = arith.constant 0 : i32
    %c0_i32_0 = arith.constant 0 : i32
    %c0_i32_1 = arith.constant 0 : i32
    return %c0_i32, %c0_i32_0 : i32, i32
  }
  func.func @transform_7(%arg0: i32) -> (i32, i32) {
    %c0_i32 = arith.constant 0 : i32
    %c0_i32_0 = arith.constant 0 : i32
    %c0_i32_1 = arith.constant 0 : i32
    return %c0_i32, %c0_i32_0 : i32, i32
  }
  func.func @transform_8(%arg0: i32) -> (i32, i32) {
    %c0_i32 = arith.constant 0 : i32
    %c0_i32_0 = arith.constant 0 : i32
    %c0_i32_1 = arith.constant 0 : i32
    return %c0_i32, %c0_i32_0 : i32, i32
  }
  func.func @transform_9(%arg0: i32) -> (i32, i32) {
    %c0_i32 = arith.constant 0 : i32
    %c0_i32_0 = arith.constant 0 : i32
    %c0_i32_1 = arith.constant 0 : i32
    return %c0_i32, %c0_i32_0 : i32, i32
  }
  func.func @transform_10(%arg0: i32) -> (i32, i32) {
    %c0_i32 = arith.constant 0 : i32
    %c0_i32_0 = arith.constant 0 : i32
    return %arg0, %c0_i32 : i32, i32
  }
}

</mosaic_0001>

<llo_original>
// kernel: decoder_forward.1
$region0: #{decoder_forward.1}
  #allocation0 [shape = 'u32[]', space=smem, size = 0x4, offset = 0x4, fixed_abs, tag = 'smem constant byte address 0x4 - core index']
  #allocation1 [shape = 'u32[72,128]{1,0:T(1,128)}', space=vmem, size = 0x9000, scoped, tag = 'internal scratch']
  %s0 = inlined_call_operand.vmem [shape: f32[16,32], index: 0, kind: input, shape index: {}]
  %s1 = inlined_call_operand.vmem [shape: f32[1,32], index: 1, kind: input, shape index: {}]
  %s2 = inlined_call_operand.vmem [shape: f32[1,32], index: 2, kind: input, shape index: {}]
  %s3 = inlined_call_operand.vmem [shape: f32[32,64], index: 3, kind: input, shape index: {}]
  %s4 = inlined_call_operand.vmem [shape: f32[1,64], index: 4, kind: input, shape index: {}]
  %s5 = inlined_call_operand.vmem [shape: f32[64,32], index: 5, kind: input, shape index: {}]
  %s6 = inlined_call_operand.vmem [shape: f32[1,32], index: 6, kind: input, shape index: {}]
  %s7 = inlined_call_operand.vmem [shape: f32[32,128], index: 7, kind: input, shape index: {}]
  %s8 = inlined_call_operand.vmem [shape: f32[1,128], index: 8, kind: input, shape index: {}]
  %s9 = inlined_call_operand.vmem [shape: f32[1,128], index: 9, kind: input, shape index: {}]
  %s10 = inlined_call_operand.vmem [shape: f32[16,128], index: 10, kind: output, shape index: {}]
  %s11 = sld [smem:[#allocation0]]
  $region73: #{decoder_forward.1} parent=0
    _
  %s13 = ssub.s32 1, %s11
  %s14 = scalar_select 0, %s13, %s11
  loop: start=0, step=1, limit=4
  $region2: #{decoder_forward.1} parent=0 // loop_pre_header
    _
  $region3: #{decoder_forward.1} parent=0 // loop_header
    %s16 = sphi 0, %s20
    %p17 = scmp.ge.s32.totalorder %s16, 4
    %s26 = sphi 0, %s28
    %s29 = sphi 0, %s26
    %s30 = sphi 0, %s29
    %s46 = sphi 0, %s30
    %s50 = sphi 0, %s50
    %s52 = sphi 0, %s50
    %s53 = sphi 0, %s52
    %s67 = sphi 0, %s53
    %s71 = sphi 0, %s71
    %s73 = sphi 0, %s71
    %s74 = sphi 0, %s73
    %s88 = sphi 0, %s74
    %s92 = sphi 0, %s92
    %s94 = sphi 0, %s92
    %s95 = sphi 0, %s94
    %s109 = sphi 0, %s95
    %s113 = sphi 0, %s113
    %s115 = sphi 0, %s113
    %s116 = sphi 0, %s115
    %s130 = sphi 0, %s116
    %s134 = sphi 0, %s134
    %s136 = sphi 0, %s134
    %s137 = sphi 0, %s136
    %s151 = sphi 0, %s137
    %s155 = sphi 0, %s155
    %s157 = sphi 0, %s155
    %s158 = sphi 0, %s157
    %s172 = sphi 0, %s158
    %s176 = sphi 0, %s176
    %s178 = sphi 0, %s176
    %s179 = sphi 0, %s178
    %s193 = sphi 0, %s179
    %s197 = sphi 0, %s197
    %s199 = sphi 0, %s197
    %s200 = sphi 0, %s199
    %s214 = sphi 0, %s200
    %s218 = sphi 0, %s218
    %s220 = sphi 0, %s218
    %s221 = sphi 0, %s220
    %s235 = sphi 0, %s221
    %s241 = sphi 0, %s243
    %s244 = sphi 0, %s241
    %s245 = sphi 0, %s244
    %s261 = sphi 0, %s245
  $region4: #{decoder_forward.1} parent=0 // loop_header_branch
    %19 = sbr.rel (%p17) target = $region8
  $region5: #{decoder_forward.1} parent=0 // loop_body
    %s21 = ssub.s32 %s16, 1
    %s22 = ssub.s32 %s16, 2
    %s23 = sadd.s32 %s16, 1
    %s24 = ssub.s32 %s16, %s23
    %p25 = scmp.eq.s32.totalorder %s24, 0
    %s27 = sadd.s32 %s26, 1
    %s28 = scalar_select %p25, %s26, %s27
    %p31 = pneg %p25
    %p32 = scmp.eq.s32.totalorder %s16, 1
    %p33 = por %p31, %p32
    %p34 = scmp.ne.s32.totalorder %s26, %s29
    %p35 = scmp.eq.s32.totalorder %s16, 0
    %p36 = por %p34, %p35
    %p37 = scmp.ne.s32.totalorder %s26, %s29
    %p38 = scmp.eq.s32.totalorder %s21, 1
    %p39 = por %p37, %p38
    %p40 = scmp.ne.s32.totalorder %s29, %s30
    %p41 = scmp.eq.s32.totalorder %s21, 0
    %p42 = por %p40, %p41
    %p43 = scmp.ne.s32.totalorder %s29, %s30
    %p44 = scmp.eq.s32.totalorder %s22, 1
    %p45 = por %p43, %p44
    %p47 = scmp.ne.s32.totalorder %s30, %s46
    %p48 = scmp.eq.s32.totalorder %s22, 0
    %p49 = por %p47, %p48
    %s51 = sadd.s32 %s50, 1
    %p54 = scmp.eq.s32.totalorder %s16, 1
    %p55 = scmp.ne.s32.totalorder %s50, %s52
    %p56 = scmp.eq.s32.totalorder %s16, 0
    %p57 = por %p55, %p56
    %p58 = scmp.ne.s32.totalorder %s50, %s52
    %p59 = scmp.eq.s32.totalorder %s21, 1
    %p60 = por %p58, %p59
    %p61 = scmp.ne.s32.totalorder %s52, %s53
    %p62 = scmp.eq.s32.totalorder %s21, 0
    %p63 = por %p61, %p62
    %p64 = scmp.ne.s32.totalorder %s52, %s53
    %p65 = scmp.eq.s32.totalorder %s22, 1
    %p66 = por %p64, %p65
    %p68 = scmp.ne.s32.totalorder %s53, %s67
    %p69 = scmp.eq.s32.totalorder %s22, 0
    %p70 = por %p68, %p69
    %s72 = sadd.s32 %s71, 1
    %p75 = scmp.eq.s32.totalorder %s16, 1
    %p76 = scmp.ne.s32.totalorder %s71, %s73
    %p77 = scmp.eq.s32.totalorder %s16, 0
    %p78 = por %p76, %p77
    %p79 = scmp.ne.s32.totalorder %s71, %s73
    %p80 = scmp.eq.s32.totalorder %s21, 1
    %p81 = por %p79, %p80
    %p82 = scmp.ne.s32.totalorder %s73, %s74
    %p83 = scmp.eq.s32.totalorder %s21, 0
    %p84 = por %p82, %p83
    %p85 = scmp.ne.s32.totalorder %s73, %s74
    %p86 = scmp.eq.s32.totalorder %s22, 1
    %p87 = por %p85, %p86
    %p89 = scmp.ne.s32.totalorder %s74, %s88
    %p90 = scmp.eq.s32.totalorder %s22, 0
    %p91 = por %p89, %p90
    %s93 = sadd.s32 %s92, 1
    %p96 = scmp.eq.s32.totalorder %s16, 1
    %p97 = scmp.ne.s32.totalorder %s92, %s94
    %p98 = scmp.eq.s32.totalorder %s16, 0
    %p99 = por %p97, %p98
    %p100 = scmp.ne.s32.totalorder %s92, %s94
    %p101 = scmp.eq.s32.totalorder %s21, 1
    %p102 = por %p100, %p101
    %p103 = scmp.ne.s32.totalorder %s94, %s95
    %p104 = scmp.eq.s32.totalorder %s21, 0
    %p105 = por %p103, %p104
    %p106 = scmp.ne.s32.totalorder %s94, %s95
    %p107 = scmp.eq.s32.totalorder %s22, 1
    %p108 = por %p106, %p107
    %p110 = scmp.ne.s32.totalorder %s95, %s109
    %p111 = scmp.eq.s32.totalorder %s22, 0
    %p112 = por %p110, %p111
    %s114 = sadd.s32 %s113, 1
    %p117 = scmp.eq.s32.totalorder %s16, 1
    %p118 = scmp.ne.s32.totalorder %s113, %s115
    %p119 = scmp.eq.s32.totalorder %s16, 0
    %p120 = por %p118, %p119
    %p121 = scmp.ne.s32.totalorder %s113, %s115
    %p122 = scmp.eq.s32.totalorder %s21, 1
    %p123 = por %p121, %p122
    %p124 = scmp.ne.s32.totalorder %s115, %s116
    %p125 = scmp.eq.s32.totalorder %s21, 0
    %p126 = por %p124, %p125
    %p127 = scmp.ne.s32.totalorder %s115, %s116
    %p128 = scmp.eq.s32.totalorder %s22, 1
    %p129 = por %p127, %p128
    %p131 = scmp.ne.s32.totalorder %s116, %s130
    %p132 = scmp.eq.s32.totalorder %s22, 0
    %p133 = por %p131, %p132
    %s135 = sadd.s32 %s134, 1
    %p138 = scmp.eq.s32.totalorder %s16, 1
    %p139 = scmp.ne.s32.totalorder %s134, %s136
    %p140 = scmp.eq.s32.totalorder %s16, 0
    %p141 = por %p139, %p140
    %p142 = scmp.ne.s32.totalorder %s134, %s136
    %p143 = scmp.eq.s32.totalorder %s21, 1
    %p144 = por %p142, %p143
    %p145 = scmp.ne.s32.totalorder %s136, %s137
    %p146 = scmp.eq.s32.totalorder %s21, 0
    %p147 = por %p145, %p146
    %p148 = scmp.ne.s32.totalorder %s136, %s137
    %p149 = scmp.eq.s32.totalorder %s22, 1
    %p150 = por %p148, %p149
    %p152 = scmp.ne.s32.totalorder %s137, %s151
    %p153 = scmp.eq.s32.totalorder %s22, 0
    %p154 = por %p152, %p153
    %s156 = sadd.s32 %s155, 1
    %p159 = scmp.eq.s32.totalorder %s16, 1
    %p160 = scmp.ne.s32.totalorder %s155, %s157
    %p161 = scmp.eq.s32.totalorder %s16, 0
    %p162 = por %p160, %p161
    %p163 = scmp.ne.s32.totalorder %s155, %s157
    %p164 = scmp.eq.s32.totalorder %s21, 1
    %p165 = por %p163, %p164
    %p166 = scmp.ne.s32.totalorder %s157, %s158
    %p167 = scmp.eq.s32.totalorder %s21, 0
    %p168 = por %p166, %p167
    %p169 = scmp.ne.s32.totalorder %s157, %s158
    %p170 = scmp.eq.s32.totalorder %s22, 1
    %p171 = por %p169, %p170
    %p173 = scmp.ne.s32.totalorder %s158, %s172
    %p174 = scmp.eq.s32.totalorder %s22, 0
    %p175 = por %p173, %p174
    %s177 = sadd.s32 %s176, 1
    %p180 = scmp.eq.s32.totalorder %s16, 1
    %p181 = scmp.ne.s32.totalorder %s176, %s178
    %p182 = scmp.eq.s32.totalorder %s16, 0
    %p183 = por %p181, %p182
    %p184 = scmp.ne.s32.totalorder %s176, %s178
    %p185 = scmp.eq.s32.totalorder %s21, 1
    %p186 = por %p184, %p185
    %p187 = scmp.ne.s32.totalorder %s178, %s179
    %p188 = scmp.eq.s32.totalorder %s21, 0
    %p189 = por %p187, %p188
    %p190 = scmp.ne.s32.totalorder %s178, %s179
    %p191 = scmp.eq.s32.totalorder %s22, 1
    %p192 = por %p190, %p191
    %p194 = scmp.ne.s32.totalorder %s179, %s193
    %p195 = scmp.eq.s32.totalorder %s22, 0
    %p196 = por %p194, %p195
    %s198 = sadd.s32 %s197, 1
    %p201 = scmp.eq.s32.totalorder %s16, 1
    %p202 = scmp.ne.s32.totalorder %s197, %s199
    %p203 = scmp.eq.s32.totalorder %s16, 0
    %p204 = por %p202, %p203
    %p205 = scmp.ne.s32.totalorder %s197, %s199
    %p206 = scmp.eq.s32.totalorder %s21, 1
    %p207 = por %p205, %p206
    %p208 = scmp.ne.s32.totalorder %s199, %s200
    %p209 = scmp.eq.s32.totalorder %s21, 0
    %p210 = por %p208, %p209
    %p211 = scmp.ne.s32.totalorder %s199, %s200
    %p212 = scmp.eq.s32.totalorder %s22, 1
    %p213 = por %p211, %p212
    %p215 = scmp.ne.s32.totalorder %s200, %s214
    %p216 = scmp.eq.s32.totalorder %s22, 0
    %p217 = por %p215, %p216
    %s219 = sadd.s32 %s218, 1
    %p222 = scmp.eq.s32.totalorder %s16, 1
    %p223 = scmp.ne.s32.totalorder %s218, %s220
    %p224 = scmp.eq.s32.totalorder %s16, 0
    %p225 = por %p223, %p224
    %p226 = scmp.ne.s32.totalorder %s218, %s220
    %p227 = scmp.eq.s32.totalorder %s21, 1
    %p228 = por %p226, %p227
    %p229 = scmp.ne.s32.totalorder %s220, %s221
    %p230 = scmp.eq.s32.totalorder %s21, 0
    %p231 = por %p229, %p230
    %p232 = scmp.ne.s32.totalorder %s220, %s221
    %p233 = scmp.eq.s32.totalorder %s22, 1
    %p234 = por %p232, %p233
    %p236 = scmp.ne.s32.totalorder %s221, %s235
    %p237 = scmp.eq.s32.totalorder %s22, 0
    %p238 = por %p236, %p237
    %s239 = ssub.s32 %s16, %s23
    %p240 = scmp.eq.s32.totalorder %s239, 0
    %s242 = sadd.s32 %s241, 1
    %s243 = scalar_select %p240, %s241, %s242
    %p246 = pneg %p240
    %p247 = scmp.eq.s32.totalorder %s16, 1
    %p248 = por %p246, %p247
    %p249 = scmp.ne.s32.totalorder %s241, %s244
    %p250 = scmp.eq.s32.totalorder %s16, 0
    %p251 = por %p249, %p250
    %p252 = scmp.ne.s32.totalorder %s241, %s244
    %p253 = scmp.eq.s32.totalorder %s21, 1
    %p254 = por %p252, %p253
    %p255 = scmp.ne.s32.totalorder %s244, %s245
    %p256 = scmp.eq.s32.totalorder %s21, 0
    %p257 = por %p255, %p256
    %p258 = scmp.ne.s32.totalorder %s244, %s245
    %p259 = scmp.eq.s32.totalorder %s22, 1
    %p260 = por %p258, %p259
    %p262 = scmp.ne.s32.totalorder %s245, %s261
    %p263 = scmp.eq.s32.totalorder %s22, 0
    %p264 = por %p262, %p263
    %p265 = scmp.le.s32.totalorder 1, %s16
    %p266 = scmp.lt.s32.totalorder %s16, 3
    %p267 = pnand %p265, %p266
    %p268 = pneg %p267
    // Predicated region
    $region9: #{decoder_forward.1} parent=5 // pred_check
      _
    $region10: #{decoder_forward.1} parent=5 // pred_check_branch
      %270 = sbr.rel (%p267) target = $region12
    $region11: #{decoder_forward.1} parent=5 // pred_region
      %s271 = ssub.s32 %s16, 1
      // Predicated region
      $region13: #{decoder_forward.1} parent=11 // pred_check
        %p272 = pneg %p63
      $region14: #{decoder_forward.1} parent=11 // pred_check_branch
        %274 = sbr.rel (%p272) target = $region16
      $region15: #{decoder_forward.1} parent=11 // pred_region
        _
      $region16: #{decoder_forward.1} parent=11 // pred_fallthru
        _
      // Predicated region
      $region17: #{decoder_forward.1} parent=11 // pred_check
        %p275 = pneg %p84
      $region18: #{decoder_forward.1} parent=11 // pred_check_branch
        %277 = sbr.rel (%p275) target = $region20
      $region19: #{decoder_forward.1} parent=11 // pred_region
        _
      $region20: #{decoder_forward.1} parent=11 // pred_fallthru
        _
      // Predicated region
      $region21: #{decoder_forward.1} parent=11 // pred_check
        %p278 = pneg %p105
      $region22: #{decoder_forward.1} parent=11 // pred_check_branch
        %280 = sbr.rel (%p278) target = $region24
      $region23: #{decoder_forward.1} parent=11 // pred_region
        _
      $region24: #{decoder_forward.1} parent=11 // pred_fallthru
        _
      // Predicated region
      $region25: #{decoder_forward.1} parent=11 // pred_check
        %p281 = pneg %p126
      $region26: #{decoder_forward.1} parent=11 // pred_check_branch
        %283 = sbr.rel (%p281) target = $region28
      $region27: #{decoder_forward.1} parent=11 // pred_region
        _
      $region28: #{decoder_forward.1} parent=11 // pred_fallthru
        _
      // Predicated region
      $region29: #{decoder_forward.1} parent=11 // pred_check
        %p284 = pneg %p147
      $region30: #{decoder_forward.1} parent=11 // pred_check_branch
        %286 = sbr.rel (%p284) target = $region32
      $region31: #{decoder_forward.1} parent=11 // pred_region
        _
      $region32: #{decoder_forward.1} parent=11 // pred_fallthru
        _
      // Predicated region
      $region33: #{decoder_forward.1} parent=11 // pred_check
        %p287 = pneg %p168
      $region34: #{decoder_forward.1} parent=11 // pred_check_branch
        %289 = sbr.rel (%p287) target = $region36
      $region35: #{decoder_forward.1} parent=11 // pred_region
        _
      $region36: #{decoder_forward.1} parent=11 // pred_fallthru
        _
      // Predicated region
      $region37: #{decoder_forward.1} parent=11 // pred_check
        %p290 = pneg %p189
      $region38: #{decoder_forward.1} parent=11 // pred_check_branch
        %292 = sbr.rel (%p290) target = $region40
      $region39: #{decoder_forward.1} parent=11 // pred_region
        _
      $region40: #{decoder_forward.1} parent=11 // pred_fallthru
        _
      // Predicated region
      $region41: #{decoder_forward.1} parent=11 // pred_check
        %p293 = pneg %p210
      $region42: #{decoder_forward.1} parent=11 // pred_check_branch
        %295 = sbr.rel (%p293) target = $region44
      $region43: #{decoder_forward.1} parent=11 // pred_region
        _
      $region44: #{decoder_forward.1} parent=11 // pred_fallthru
        _
      // Predicated region
      $region45: #{decoder_forward.1} parent=11 // pred_check
        %p296 = pneg %p231
      $region46: #{decoder_forward.1} parent=11 // pred_check_branch
        %298 = sbr.rel (%p296) target = $region48
      $region47: #{decoder_forward.1} parent=11 // pred_region
        _
      $region48: #{decoder_forward.1} parent=11 // pred_fallthru
        _
    $region12: #{decoder_forward.1} parent=5 // pred_fallthru
      _
    %p299 = scmp.lt.s32.totalorder %s16, 2
    // Predicated region
    $region49: #{decoder_forward.1} parent=5 // pred_check
      %p300 = pneg %p299
    $region50: #{decoder_forward.1} parent=5 // pred_check_branch
      %302 = sbr.rel (%p300) target = $region52
    $region51: #{decoder_forward.1} parent=5 // pred_region
      // Predicated region
      $region53: #{decoder_forward.1} parent=51 // pred_check
        %p303 = pneg %p36
      $region54: #{decoder_forward.1} parent=51 // pred_check_branch
        %305 = sbr.rel (%p303) target = $region56
      $region55: #{decoder_forward.1} parent=51 // pred_region
        %p306 = scmp.lt.s32.totalorder %s16, 1
        %s307 = scalar_select %p306, %s16, 1
        %s308 = smul.addr %s307, 8
        %s309 = scalar_lea.vmem %s0, %s308
      $region56: #{decoder_forward.1} parent=51 // pred_fallthru
        _
    $region52: #{decoder_forward.1} parent=5 // pred_fallthru
      _
    %p310 = scmp.le.s32.totalorder 1, %s16
    %p311 = scmp.lt.s32.totalorder %s16, 3
    %p312 = pnand %p310, %p311
    %p313 = pneg %p312
    // Predicated region
    $region57: #{decoder_forward.1} parent=5 // pred_check
      _
    $region58: #{decoder_forward.1} parent=5 // pred_check_branch
      %315 = sbr.rel (%p312) target = $region60
    $region59: #{decoder_forward.1} parent=5 // pred_region
      %s316 = ssub.s32 %s16, 1
      %p317 = scmp.lt.s32.totalorder %s21, 1
      %s318 = scalar_select %p317, %s21, 1
      %s319 = smul.addr %s318, 8
      %s320 = scalar_lea.vmem %s0, %s319
      %p321 = pneg %p42
      %p322 = pneg %p39
      %p323 = pneg %p63
      %p324 = pneg %p60
      %p325 = pneg %p84
      %p326 = pneg %p81
      %p327 = pneg %p105
      %p328 = pneg %p102
      %p329 = pneg %p126
      %p330 = pneg %p123
      %p331 = pneg %p147
      %p332 = pneg %p144
      %p333 = pneg %p168
      %p334 = pneg %p165
      %p335 = pneg %p189
      %p336 = pneg %p186
      %p337 = pneg %p210
      %p338 = pneg %p207
      %p339 = pneg %p231
      %p340 = pneg %p228
      %p341 = pneg %p257
      %p342 = pneg %p254
      %p343 = scmp.lt.s32.totalorder %s21, 1
      %s344 = scalar_select %p343, %s21, 1
      %s345 = smul.addr %s344, 8
      %s346 = scalar_lea.vmem %s10, %s345
      %p347 = scmp.lt.s32.totalorder %s21, 1
      %s348 = scalar_select %p347, %s21, 1
      %s349 = smul.addr %s348, 8
      %s350 = scalar_lea.vmem %s0, %s349
      %p351 = scmp.lt.s32.totalorder %s21, 1
      %s352 = scalar_select %p351, %s21, 1
      %s353 = smul.addr %s352, 8
      %s354 = scalar_lea.vmem %s10, %s353
      %v355 = vld [vmem:[%s350] sm:$0xff]
      %vm356 = vcmask 261120
      %v357 = vsel %vm356, %v355, 0.0
      %358 = vadd.xlane.f32.xlu0 %v357
      %v359 = vpop.xlane.xlu0 %358
      %v360 = vrcp.pop 32.0
      %v361 = vmul.f32 32.0, %v360
      %v362 = vsub.f32 1.0, %v361
      %v363 = vmul.f32 %v360, %v362
      %v364 = vadd.f32 %v360, %v363
      %vm365 = vweird.f32 %v360
      %v366 = vsel %vm365, %v360, %v364
      %v367 = vmul.f32 %v359, %v366
      %v368 = vsub.f32 %v355, %v367
      %v369 = vmul.f32 %v368, %v368
      %v370 = vsel %vm356, %v369, 0.0
      %371 = vadd.xlane.f32.xlu0 %v370
      %v372 = vpop.xlane.xlu0 %371
      %v373 = vmul.f32 %v372, %v366
      %v374 = vadd.f32 %v373, 1e-06
      %v375 = vrsqrt.pop %v374
      %v376 = vmul.f32 %v375, %v374
      %v377 = vmul.f32 %v376, %v375
      %v378 = vmul.f32 0.5, %v377
      %v379 = vsub.f32 1.5, %v378
      %v380 = vmul.f32 %v375, %v379
      %vm381 = vweird.f32 %v374
      %vm382 = vweird.f32 %v375
      %vm383 = vmor %vm381, %vm382
      %v384 = vsel %vm383, %v375, %v380
      %v385 = vmul.f32 %v368, %v384
      %v386 = vld [vmem:[%s1] sm:$0x1]
      %v388 = vperm.slane %v386, 0
      %v390 = vmul.f32 %v385, %v388
      %v391 = vld [vmem:[%s2] sm:$0x1]
      %v393 = vperm.slane %v391, 0
      %v395 = vadd.f32 %v390, %v393
      %v396 = vld [vmem:[%s3] sm:$0xff]
      %v397 = vld [vmem:[%s3 + $0x8] sm:$0xff]
      %v398 = vld [vmem:[%s3 + $0x10] sm:$0xff]
      %v399 = vld [vmem:[%s3 + $0x18] sm:$0xff]
      %v400 = vld [vmem:[%s4] sm:$0x1]
      %v402 = vperm.slane %v400, 0
      %v405 = vsel %vm356, %v395, 0
      %407 = vmatpush.msra.mxu0 0.0
      %408 = vmatpush.msra.mxu0 0.0
      %409 = vmatpush.msra.mxu0 0.0
      %410 = vmatpush.msra.mxu0 0.0
      %411 = vmatpush.msra.mxu0 0.0
      %412 = vmatpush.msra.mxu0 0.0
      %413 = vmatpush.msra.mxu0 0.0
      %414 = vmatpush.msra.mxu0 0.0
      %415 = vmatpush.msra.mxu0 0.0
      %416 = vmatpush.msra.mxu0 0.0
      %417 = vmatpush.msra.mxu0 0.0
      %418 = vmatpush.msra.mxu0 0.0
      %419 = vmatpush.msra.mxu0 %v399
      %420 = vmatpush.msra.mxu0 %v398
      %421 = vmatpush.msra.mxu0 %v397
      %422 = vmatpush.msra.mxu0 %v396
      %423 = vmatmul.f32.gmra.mxu0 %v405
      %v424 = vpop.f32.mrf.mxu0
      %v425 = vadd.f32 %v402, %v424
      %426 = vdwg.mxu0
      %v427 = vmax.f32 %v425, 0.0
      %v428 = vld [vmem:[%s5] sm:$0xff]
      %v429 = vld [vmem:[%s5 + $0x8] sm:$0xff]
      %v430 = vld [vmem:[%s5 + $0x10] sm:$0xff]
      %v431 = vld [vmem:[%s5 + $0x18] sm:$0xff]
      %v432 = vld [vmem:[%s5 + $0x20] sm:$0xff]
      %v433 = vld [vmem:[%s5 + $0x28] sm:$0xff]
      %v434 = vld [vmem:[%s5 + $0x30] sm:$0xff]
      %v435 = vld [vmem:[%s5 + $0x38] sm:$0xff]
      %v436 = vld [vmem:[%s6] sm:$0x1]
      %v438 = vperm.slane %v436, 0
      %vm440 = vcmask 523264
      %v442 = vsel %vm440, %v427, 0
      %444 = vmatpush.msra.mxu0 0.0
      %445 = vmatpush.msra.mxu0 0.0
      %446 = vmatpush.msra.mxu0 0.0
      %447 = vmatpush.msra.mxu0 0.0
      %448 = vmatpush.msra.mxu0 0.0
      %449 = vmatpush.msra.mxu0 0.0
      %450 = vmatpush.msra.mxu0 0.0
      %451 = vmatpush.msra.mxu0 0.0
      %452 = vmatpush.msra.mxu0 %v435
      %453 = vmatpush.msra.mxu0 %v434
      %454 = vmatpush.msra.mxu0 %v433
      %455 = vmatpush.msra.mxu0 %v432
      %456 = vmatpush.msra.mxu0 %v431
      %457 = vmatpush.msra.mxu0 %v430
      %458 = vmatpush.msra.mxu0 %v429
      %459 = vmatpush.msra.mxu0 %v428
      %460 = vmatmul.f32.gmra.mxu0 %v442
      %v461 = vpop.f32.mrf.mxu0
      %v462 = vadd.f32 %v438, %v461
      %463 = vdwg.mxu0
      %v464 = vadd.f32 %v462, %v355
      %v465 = vld [vmem:[%s7] sm:$0xff]
      %v466 = vld [vmem:[%s7 + $0x8] sm:$0xff]
      %v467 = vld [vmem:[%s7 + $0x10] sm:$0xff]
      %v468 = vld [vmem:[%s7 + $0x18] sm:$0xff]
      %v469 = vld [vmem:[%s8] sm:$0x1]
      %v471 = vperm.slane %v469, 0
      %v474 = vsel %vm356, %v464, 0
      %476 = vmatpush.msra.mxu0 0.0
      %477 = vmatpush.msra.mxu0 0.0
      %478 = vmatpush.msra.mxu0 0.0
      %479 = vmatpush.msra.mxu0 0.0
      %480 = vmatpush.msra.mxu0 0.0
      %481 = vmatpush.msra.mxu0 0.0
      %482 = vmatpush.msra.mxu0 0.0
      %483 = vmatpush.msra.mxu0 0.0
      %484 = vmatpush.msra.mxu0 0.0
      %485 = vmatpush.msra.mxu0 0.0
      %486 = vmatpush.msra.mxu0 0.0
      %487 = vmatpush.msra.mxu0 0.0
      %488 = vmatpush.msra.mxu0 %v468
      %489 = vmatpush.msra.mxu0 %v467
      %490 = vmatpush.msra.mxu0 %v466
      %491 = vmatpush.msra.mxu0 %v465
      %492 = vmatmul.f32.gmra.mxu0 %v474
      %v493 = vpop.f32.mrf.mxu0
      %v494 = vadd.f32 %v471, %v493
      %495 = vdwg.mxu0
      %v496 = vld [vmem:[%s9] sm:$0x1]
      %vm497 = vcmp.gt.f32.partialorder %v496, 0.5
      %v498 = vmax.f32 %v494, 0.0
      %v499 = vsel %vm497, 1, 0
      %v500 = vperm.slane %v499, 0
      %vm501 = vcmp.eq.s32.totalorder %v500, 1
      %v502 = vsel %vm501, %v494, %v498
      %503 = vst [vmem:[%s354] sm:$0xff] %v502
      %p504 = scmp.lt.s32.totalorder %s21, 1
      %s505 = scalar_select %p504, %s21, 1
      %s506 = smul.addr %s505, 8
      %s507 = scalar_lea.vmem %s10, %s506
      // Predicated region
      $region61: #{decoder_forward.1} parent=59 // pred_check
        %p508 = pneg %p254
      $region62: #{decoder_forward.1} parent=59 // pred_check_branch
        %510 = sbr.rel (%p508) target = $region64
      $region63: #{decoder_forward.1} parent=59 // pred_region
        _
      $region64: #{decoder_forward.1} parent=59 // pred_fallthru
        _
    $region60: #{decoder_forward.1} parent=5 // pred_fallthru
      _
    %p511 = scmp.le.s32.totalorder 2, %s16
    // Predicated region
    $region65: #{decoder_forward.1} parent=5 // pred_check
      %p512 = pneg %p511
    $region66: #{decoder_forward.1} parent=5 // pred_check_branch
      %514 = sbr.rel (%p512) target = $region68
    $region67: #{decoder_forward.1} parent=5 // pred_region
      %s515 = ssub.s32 %s16, 2
      // Predicated region
      $region69: #{decoder_forward.1} parent=67 // pred_check
        %p516 = pneg %p260
      $region70: #{decoder_forward.1} parent=67 // pred_check_branch
        %518 = sbr.rel (%p516) target = $region72
      $region71: #{decoder_forward.1} parent=67 // pred_region
        %p519 = scmp.lt.s32.totalorder %s22, 1
        %s520 = scalar_select %p519, %s22, 1
        %s521 = smul.addr %s520, 8
        %s522 = scalar_lea.vmem %s10, %s521
      $region72: #{decoder_forward.1} parent=67 // pred_fallthru
        _
    $region68: #{decoder_forward.1} parent=5 // pred_fallthru
      _
  $region6: #{decoder_forward.1} parent=0 // loop_footer
    %s20 = sadd.s32 1, %s16
  $region7: #{decoder_forward.1} parent=0 // loop_footer_branch
    %15 = sbr.rel target = $region3
  $region8: #{decoder_forward.1} parent=0 // loop_exit
    _

</llo_original>
